<compile_context>
chip_gen: v7x
topology: tpu7x:2x2x1
jax: 0.10.0
libtpu: 0.0.40
codegen_flags: <defaults>
</compile_context>

<pallas_src>
import functools

import jax
import jax.numpy as jnp
from jax.experimental import pallas as pl
from jax.experimental.pallas import tpu as pltpu

EPS = 1e-5


# ----------------------------- VMEM budgeting ------------------------------- #

def _vmem_budgets():
    """Generation-aware VMEM budgets (v5e/v6e: 128 MiB physical, v7x: 64 MiB)."""
    try:
        cap = int(pltpu.get_tpu_info().vmem_capacity_bytes)
    except Exception:
        cap = 64 * 1024 * 1024            # conservative (v7x-sized) fallback
    vmem_limit = min(int(cap * 0.75), 100 * 1024 * 1024)
    # Budget for the double-buffered (x-tile + out-tile) working set of the
    # streaming passes; leaves headroom for resident weights, accumulators and
    # compiler-internal scratch.
    tile_budget = int(vmem_limit * 0.55)
    # Budget for keeping x (+ its conv output) fully resident (single-pass path).
    fused_budget = int(vmem_limit * 0.55)
    return vmem_limit, tile_budget, fused_budget


def _plan_lane_tiling(L, cin, cout, xbytes, tile_budget, max_lane_tile=None):
    """Return (Lp, tl): (possibly padded) pixel count and lane tile size."""
    bytes_per_lane = 2 * (cin + cout) * xbytes          # double-buffered x + out tiles
    budget_tl = max(128, (tile_budget // bytes_per_lane) // 128 * 128)
    if max_lane_tile is not None:                        # test / tuning knob
        budget_tl = min(budget_tl, max(128, (max_lane_tile // 128) * 128))

    if L % 128 == 0:
        tl = min(L, budget_tl)
        while L % tl:
            tl -= 128
        return L, tl

    # L is not lane-divisible.  If a full-L tile fits the budget, keep it exact
    # (no extra pad traffic); otherwise pad the pixel axis to the next multiple
    # of 128 so the lane tile can be bounded by the budget (v7x's 64 MiB VMEM).
    if L * bytes_per_lane <= tile_budget and max_lane_tile is None:
        return L, L
    Lp = ((L + 127) // 128) * 128
    tl = min(Lp, budget_tl)
    while Lp % tl:
        tl -= 128
    return Lp, tl


# ------------------------------ Pallas kernels ------------------------------ #

def _stats_kernel(x_ref, w_ref, sum_ref, sq_ref):
    """Accumulate per-channel first/second moments of y = W @ x.

    x_ref:   (Cin, TL)   input tile (pixels on lanes)
    w_ref:   (Cout, Cin) conv weight (resident)
    sum_ref: (Cout, 1)   resident accumulator of sum(y) over pixels
    sq_ref:  (Cout, 1)   resident accumulator of sum(y*y) over pixels

    Natural MXU orientation: no transpose, no Cin x Cin Gram accumulator; the
    extra matmul flops are free filler while the pass is HBM-bound.
    """
    l = pl.program_id(2)

    @pl.when(l == 0)
    def _():
        sum_ref[...] = jnp.zeros_like(sum_ref)
        sq_ref[...] = jnp.zeros_like(sq_ref)

    yt = jnp.dot(w_ref[...], x_ref[...], preferred_element_type=jnp.float32)
    sum_ref[...] += jnp.sum(yt, axis=1, keepdims=True)
    sq_ref[...] += jnp.sum(yt * yt, axis=1, keepdims=True)


def _conv_bn_kernel(x_ref, w_ref, shift_ref, o_ref):
    """Fused 1x1 conv + BatchNorm apply (BN scale folded into w, shift is the bias).

    x_ref:     (Cin, TL)   input tile
    w_ref:     (Cout, Cin) BN-scaled weight (resident)
    shift_ref: (Cout, 1)   per-channel shift (resident, f32)
    o_ref:     (Cout, TL)  normalized output tile (already NCHW)
    """
    y = jnp.dot(w_ref[...], x_ref[...], preferred_element_type=jnp.float32)
    o_ref[...] = (y + shift_ref[...]).astype(o_ref.dtype)


def _fused_kernel(x_ref, w_ref, gamma_ref, beta_ref, o_ref, *, n_batch, m_count):
    """Single-pass conv + BN when x fits in VMEM: x is read from HBM exactly once.

    x_ref:  (N, Cin, L)  whole (reshaped) input, resident
    w_ref:  (Cout, Cin)  conv weight
    gamma_ref/beta_ref: (Cout, 1) f32 BN affine params (selected branch)
    o_ref:  (N, Cout, L) normalized output
    """
    cout = w_ref.shape[0]
    w = w_ref[...]
    sum_y = jnp.zeros((cout, 1), jnp.float32)
    sum_sq = jnp.zeros((cout, 1), jnp.float32)
    for n in range(n_batch):            # n_batch is small & static (gated in wrapper)
        yt = jnp.dot(w, x_ref[n], preferred_element_type=jnp.float32)
        sum_y = sum_y + jnp.sum(yt, axis=1, keepdims=True)
        sum_sq = sum_sq + jnp.sum(yt * yt, axis=1, keepdims=True)
    mean = sum_y * (1.0 / m_count)
    var = jnp.maximum(sum_sq * (1.0 / m_count) - mean * mean, 0.0)
    scale = gamma_ref[...] * jax.lax.rsqrt(var + EPS)
    shift = beta_ref[...] - mean * scale
    for n in range(n_batch):            # recompute yt (MXU is free; avoids a y scratch)
        yt = jnp.dot(w, x_ref[n], preferred_element_type=jnp.float32)
        o_ref[n] = (yt * scale + shift).astype(o_ref.dtype)


# ------------------------------ Pallas wrappers ------------------------------ #

def _stats_pass(x3, w, tl, n_split, vmem_limit):
    """x3: (N, Cin, Lp) -> per-(split, n) partial sum(y), sum(y*y): (NS, N, Cout, 1)."""
    N, Cin, Lp = x3.shape
    Cout = w.shape[0]
    lt = (Lp // tl) // n_split
    grid = (n_split, N, lt)
    return pl.pallas_call(
        _stats_kernel,
        out_shape=(
            jax.ShapeDtypeStruct((n_split, N, Cout, 1), jnp.float32),
            jax.ShapeDtypeStruct((n_split, N, Cout, 1), jnp.float32),
        ),
        grid_spec=pltpu.PrefetchScalarGridSpec(
            num_scalar_prefetch=0,
            grid=grid,
            in_specs=[
                pl.BlockSpec((None, Cin, tl), lambda s, n, l: (n, 0, s * lt + l)),
                pl.BlockSpec((Cout, Cin), lambda s, n, l: (0, 0)),
            ],
            out_specs=[
                pl.BlockSpec((None, None, Cout, 1), lambda s, n, l: (s, n, 0, 0)),
                pl.BlockSpec((None, None, Cout, 1), lambda s, n, l: (s, n, 0, 0)),
            ],
        ),
        compiler_params=pltpu.CompilerParams(
            dimension_semantics=("parallel", "parallel", "arbitrary"),
            vmem_limit_bytes=vmem_limit,
        ),
        cost_estimate=pl.CostEstimate(
            flops=2 * N * Lp * Cin * Cout + 3 * N * Lp * Cout,
            transcendentals=0,
            bytes_accessed=int(x3.size) * x3.dtype.itemsize
            + Cout * Cin * x3.dtype.itemsize
            + 8 * n_split * N * Cout,
        ),
    )(x3, w)


def _conv_bn_pass(x3, w_scaled, shift, tl, vmem_limit):
    """x3: (N, Cin, Lp), w_scaled: (Cout, Cin), shift: (Cout, 1) -> (N, Cout, Lp)."""
    N, Cin, Lp = x3.shape
    Cout = w_scaled.shape[0]
    grid = (N, Lp // tl)
    return pl.pallas_call(
        _conv_bn_kernel,
        out_shape=jax.ShapeDtypeStruct((N, Cout, Lp), x3.dtype),
        grid_spec=pltpu.PrefetchScalarGridSpec(
            num_scalar_prefetch=0,
            grid=grid,
            in_specs=[
                pl.BlockSpec((None, Cin, tl), lambda n, l: (n, 0, l)),
                pl.BlockSpec((Cout, Cin), lambda n, l: (0, 0)),
                pl.BlockSpec((Cout, 1), lambda n, l: (0, 0)),
            ],
            out_specs=pl.BlockSpec((None, Cout, tl), lambda n, l: (n, 0, l)),
        ),
        compiler_params=pltpu.CompilerParams(
            dimension_semantics=("parallel", "parallel"),
            vmem_limit_bytes=vmem_limit,
        ),
        cost_estimate=pl.CostEstimate(
            flops=2 * N * Lp * Cin * Cout,
            transcendentals=0,
            bytes_accessed=(int(x3.size) * x3.dtype.itemsize
                            + N * Cout * Lp * x3.dtype.itemsize
                            + Cout * Cin * x3.dtype.itemsize + Cout * 4),
        ),
    )(x3, w_scaled, shift)


def _fused_pass(x3, w, gamma2, beta2, m_count, vmem_limit):
    """Single pallas_call: x resident in VMEM, read from HBM once."""
    N, Cin, Lp = x3.shape
    Cout = w.shape[0]
    kernel = functools.partial(_fused_kernel, n_batch=N, m_count=float(m_count))
    return pl.pallas_call(
        kernel,
        out_shape=jax.ShapeDtypeStruct((N, Cout, Lp), x3.dtype),
        grid_spec=pltpu.PrefetchScalarGridSpec(
            num_scalar_prefetch=0,
            grid=(1,),
            in_specs=[
                pl.BlockSpec((N, Cin, Lp), lambda i: (0, 0, 0)),
                pl.BlockSpec((Cout, Cin), lambda i: (0, 0)),
                pl.BlockSpec((Cout, 1), lambda i: (0, 0)),
                pl.BlockSpec((Cout, 1), lambda i: (0, 0)),
            ],
            out_specs=pl.BlockSpec((N, Cout, Lp), lambda i: (0, 0, 0)),
        ),
        compiler_params=pltpu.CompilerParams(
            dimension_semantics=("arbitrary",),
            vmem_limit_bytes=vmem_limit,
        ),
        cost_estimate=pl.CostEstimate(
            flops=4 * N * Lp * Cin * Cout,
            transcendentals=Cout,
            bytes_accessed=(int(x3.size) * x3.dtype.itemsize
                            + N * Cout * Lp * x3.dtype.itemsize
                            + Cout * Cin * x3.dtype.itemsize + 8 * Cout),
        ),
    )(x3, w, gamma2, beta2)


# ------------------------------ Params / forward ----------------------------- #

def init_downsample_params(key, inplanes, planes, kernel_size=1, stride=1):
    assert kernel_size == 1, "DownSample is used with kernel_size=1"
    k_conv, k_gs, k_bs, k_gt, k_bt = jax.random.split(key, 5)
    conv_w = jax.random.normal(k_conv, (planes, inplanes, 1, 1), jnp.float32) * 0.1
    return dict(
        conv_w=conv_w,
        stride=stride,
        bn_s_gamma=1.0 + 0.01 * jax.random.normal(k_gs, (planes,), jnp.float32),
        bn_s_beta=0.01 * jax.random.normal(k_bs, (planes,), jnp.float32),
        bn_t_gamma=1.0 + 0.01 * jax.random.normal(k_gt, (planes,), jnp.float32),
        bn_t_beta=0.01 * jax.random.normal(k_bt, (planes,), jnp.float32),
    )


def downsample_forward(params, x, ST="S", force_two_pass=False, max_lane_tile=None):
    """Forward of DownSample: 1x1 conv (stride) -> BatchNorm2d (branch by ST).

    x: (N, Cin, H, W) float32 or bfloat16, NCHW. Returns (N, Cout, H', W') in x.dtype.
    """
    stride = params["stride"]
    conv_w = params["conv_w"]                        # (Cout, Cin, 1, 1)
    Cout, Cin = conv_w.shape[0], conv_w.shape[1]
    w32 = conv_w.reshape(Cout, Cin).astype(jnp.float32)

    if stride != 1:
        # TODO(synk): fold the stride into the kernel DMA. A blocked index_map cannot
        # skip every s-th row (wanted rows are interleaved at stride granularity), so a
        # true fold needs either a (N,Cin,H//s,s,W) view with a size-1 block on the
        # synthetic stride axis or a manual strided make_async_copy, plus in-register
        # lane compaction for the W stride; the clean fix is a channels-on-lanes layout
        # variant (also the right answer for tiny H'*W' maps). Until then the decimated
        # copy is materialized once and all downstream passes run on the smaller array.
        x = x[:, :, ::stride, ::stride]

    N, _, H, W = x.shape
    L = H * W
    M = N * L                                        # true BN pixel count
    cdt = x.dtype                                    # compute/storage dtype follows x
    xbytes = x.dtype.itemsize

    vmem_limit, tile_budget, fused_budget = _vmem_budgets()

    x3 = x.reshape(N, Cin, L)                        # free reshape, stays NCHW

    if ST == "S":
        gamma, beta = params["bn_s_gamma"], params["bn_s_beta"]
    else:
        gamma, beta = params["bn_t_gamma"], params["bn_t_beta"]
    gamma = gamma.astype(jnp.float32)
    beta = beta.astype(jnp.float32)

    # ---- single-pass fused path: x resident in VMEM, read from HBM once ---- #
    fused_bytes = (2 * (Cin + Cout) * N * L * xbytes     # in/out blocks (x2 buffers)
                   + 2 * Cout * L * 4                    # yt temporaries (f32)
                   + Cout * Cin * 4)
    if (not force_two_pass) and N <= 32 and fused_bytes <= fused_budget:
        out3 = _fused_pass(x3, w32.astype(cdt), gamma[:, None], beta[:, None],
                           M, vmem_limit)
        return out3.reshape(N, Cout, H, W)

    # ---- streaming two-pass path (lane-dense pixel tiles) ------------------ #
    Lp, tl = _plan_lane_tiling(L, Cin, Cout, xbytes, tile_budget, max_lane_tile)
    if Lp != L:
        # Zero pixels contribute nothing to the y-moments (divisor uses the true M);
        # the padded output columns are sliced off below.
        x3 = jnp.pad(x3, ((0, 0), (0, 0), (0, Lp - L)))

    n_tiles = Lp // tl
    n_split = 2 if (n_tiles % 2 == 0 and n_tiles >= 2) else 1   # keep both v7x TCs busy

    # Pass 1: per-channel y-moments (reads x once, tiny outputs).
    sum_p, sq_p = _stats_pass(x3, w32.astype(cdt), tl, n_split, vmem_limit)
    sum_y = jnp.sum(sum_p, axis=(0, 1))              # (Cout, 1)
    sum_sq = jnp.sum(sq_p, axis=(0, 1))              # (Cout, 1)

    mean_y = sum_y / M
    # NOTE: one-pass E[y^2]-E[y]^2 in f32, clamped at 0.
    # TODO(synk): per-channel pre-shift / Welford-style accumulation for activations
    # with means large relative to their std.
    var_y = jnp.maximum(sum_sq / M - mean_y * mean_y, 0.0)

    scale = gamma[:, None] * jax.lax.rsqrt(var_y + EPS)          # (Cout, 1)
    w_scaled = (w32 * scale).astype(cdt)                         # fold BN scale into W
    shift = beta[:, None] - mean_y * scale                       # (Cout, 1) f32

    # Pass 2: fused conv + BN apply; the normalized output is written exactly once.
    out3 = _conv_bn_pass(x3, w_scaled, shift, tl, vmem_limit)    # (N, Cout, Lp)
    if Lp != L:
        out3 = out3[:, :, :L]
    return out3.reshape(N, Cout, H, W)

    # TODO(synk): PyTorch train-mode BN also updates running_mean/running_var buffers
    # (a stateful side effect); only the forward output is reproduced here.


# -------------------------------- Reference ---------------------------------- #

def downsample_reference(params, x, ST="S"):
    stride = params["stride"]
    conv_w = params["conv_w"]
    xs = x[:, :, ::stride, ::stride].astype(jnp.float32)
    y = jnp.einsum("nihw,oi->nohw", xs,
                   conv_w.reshape(conv_w.shape[0], conv_w.shape[1]))
    mean = jnp.mean(y, axis=(0, 2, 3), keepdims=True)
    var = jnp.mean((y - mean) ** 2, axis=(0, 2, 3), keepdims=True)
    if ST == "S":
        gamma, beta = params["bn_s_gamma"], params["bn_s_beta"]
    else:
        gamma, beta = params["bn_t_gamma"], params["bn_t_beta"]
    return ((y - mean) * jax.lax.rsqrt(var + EPS) * gamma[None, :, None, None]
            + beta[None, :, None, None])


# ---------------------------------- Main ------------------------------------- #

if __name__ == "__main__":
    key = jax.random.PRNGKey(0)
    k_param, k_param2, k_x, k_x2 = jax.random.split(key, 4)

    inplanes, planes = 4, 8
    params = init_downsample_params(k_param, inplanes, planes, kernel_size=1, stride=1)
    params_s2 = init_downsample_params(k_param2, inplanes, planes, kernel_size=1, stride=2)

    x = jax.random.normal(k_x, (2, inplanes, 16, 16), jnp.float32)     # NCHW
    x2 = jax.random.normal(k_x2, (2, inplanes, 16, 32), jnp.float32)

    # 1) single-pass fused path (x resident in VMEM, read once), both BN branches.
    out_s = jax.block_until_ready(downsample_forward(params, x, ST="S"))
    out_t = jax.block_until_ready(downsample_forward(params, x, ST="T"))
    ref_s = downsample_reference(params, x, ST="S")
    ref_t = downsample_reference(params, x, ST="T")
    assert out_s.shape == (2, planes, 16, 16)
    assert jnp.allclose(out_s, ref_s, rtol=1e-4, atol=1e-4)
    assert jnp.allclose(out_t, ref_t, rtol=1e-4, atol=1e-4)

    # 2) streaming two-pass path (stats kernel + fused conv/BN kernel).
    out_2p = jax.block_until_ready(
        downsample_forward(params, x, ST="S", force_two_pass=True))
    assert jnp.allclose(out_2p, ref_s, rtol=1e-4, atol=1e-4)

    # 3) two-pass with multiple lane tiles + dual-split stats grid (v7x megacore path).
    out_mt = jax.block_until_ready(
        downsample_forward(params, x2, ST="T", force_two_pass=True, max_lane_tile=128))
    ref_mt = downsample_reference(params, x2, ST="T")
    assert jnp.allclose(out_mt, ref_mt, rtol=1e-4, atol=1e-4)

    # 4) stride=2 (decimated spatial dims, L not a multiple of 128).
    out_sd = jax.block_until_ready(downsample_forward(params_s2, x, ST="S"))
    out_sd2 = jax.block_until_ready(
        downsample_forward(params_s2, x, ST="T", force_two_pass=True))
    ref_sd = downsample_reference(params_s2, x, ST="S")
    ref_sd2 = downsample_reference(params_s2, x, ST="T")
    assert out_sd.shape == (2, planes, 8, 8)
    assert jnp.allclose(out_sd, ref_sd, rtol=1e-4, atol=1e-4)
    assert jnp.allclose(out_sd2, ref_sd2, rtol=1e-4, atol=1e-4)

    # 5) bf16 activations through the two-pass path (bf16 reads/writes, f32 accumulation).
    x_bf16 = x.astype(jnp.bfloat16)
    out_bf = jax.block_until_ready(
        downsample_forward(params, x_bf16, ST="S", force_two_pass=True))
    assert out_bf.dtype == jnp.bfloat16
    assert jnp.allclose(out_bf.astype(jnp.float32), ref_s, rtol=5e-2, atol=5e-2)

    print("KERNEL_OK")
</pallas_src>

<mosaic_0001>
module attributes {stable_mosaic.version = 11 : i64} {
  func.func @_fused_kernel(%arg0: i32, %arg1: memref<2x4x256xf32, #tpu.memory_space<vmem>>, %arg2: memref<8x4xf32, #tpu.memory_space<vmem>>, %arg3: memref<8x1xf32, #tpu.memory_space<vmem>>, %arg4: memref<8x1xf32, #tpu.memory_space<vmem>>, %arg5: memref<2x8x256xf32, #tpu.memory_space<vmem>>) attributes {dimension_semantics = [#tpu.dimension_semantics<arbitrary>], iteration_bounds = array<i64: 1>, scalar_prefetch = 0 : i64, scratch_operands = 0 : i64, tpu.core_type = #tpu.core_type<tc>, window_params = [{pipeline_mode = #tpu.pipeline_mode<synchronous>, transform_indices = @transform_0, window_bounds = array<i64: 2, 4, 256>}, {pipeline_mode = #tpu.pipeline_mode<synchronous>, transform_indices = @transform_1, window_bounds = array<i64: 8, 4>}, {pipeline_mode = #tpu.pipeline_mode<synchronous>, transform_indices = @transform_2, window_bounds = array<i64: 8, 1>}, {pipeline_mode = #tpu.pipeline_mode<synchronous>, transform_indices = @transform_3, window_bounds = array<i64: 8, 1>}, {pipeline_mode = #tpu.pipeline_mode<synchronous>, transform_indices = @transform_4, window_bounds = array<i64: 2, 8, 256>}]} {
    %c0 = arith.constant 0 : index
    %c0_0 = arith.constant 0 : index
    %0 = vector.load %arg2[%c0, %c0_0] : memref<8x4xf32, #tpu.memory_space<vmem>>, vector<8x4xf32>
    %cst = arith.constant 0.000000e+00 : f32
    %1 = vector.broadcast %cst : f32 to vector<8x1xf32>
    %cst_1 = arith.constant 0.000000e+00 : f32
    %2 = vector.broadcast %cst_1 : f32 to vector<8x1xf32>
    %c0_2 = arith.constant 0 : index
    %c0_3 = arith.constant 0 : index
    %c0_4 = arith.constant 0 : index
    %3 = vector.load %arg1[%c0_2, %c0_3, %c0_4] : memref<2x4x256xf32, #tpu.memory_space<vmem>>, vector<1x4x256xf32>
    %4 = vector.shape_cast %3 : vector<1x4x256xf32> to vector<4x256xf32>
    %cst_5 = arith.constant dense<0.000000e+00> : vector<8x256xf32>
    %5 = tpu.matmul %0, %4, %cst_5 {dimension_numbers = #tpu.dot_dimension_numbers<[1], [0], [0], [1], [0, 0, 1, 1], [], []>} : vector<8x4xf32>, vector<4x256xf32>, vector<8x256xf32> -> vector<8x256xf32>
    %cst_6 = arith.constant dense<0.000000e+00> : vector<8xf32>
    %6 = vector.multi_reduction <add>, %5, %cst_6 [1] : vector<8x256xf32> to vector<8xf32>
    %7 = vector.shape_cast %6 : vector<8xf32> to vector<8x1xf32>
    %8 = arith.addf %1, %7 : vector<8x1xf32>
    %9 = arith.mulf %5, %5 : vector<8x256xf32>
    %cst_7 = arith.constant dense<0.000000e+00> : vector<8xf32>
    %10 = vector.multi_reduction <add>, %9, %cst_7 [1] : vector<8x256xf32> to vector<8xf32>
    %11 = vector.shape_cast %10 : vector<8xf32> to vector<8x1xf32>
    %12 = arith.addf %2, %11 : vector<8x1xf32>
    %c1 = arith.constant 1 : index
    %c0_8 = arith.constant 0 : index
    %c0_9 = arith.constant 0 : index
    %13 = vector.load %arg1[%c1, %c0_8, %c0_9] : memref<2x4x256xf32, #tpu.memory_space<vmem>>, vector<1x4x256xf32>
    %14 = vector.shape_cast %13 : vector<1x4x256xf32> to vector<4x256xf32>
    %cst_10 = arith.constant dense<0.000000e+00> : vector<8x256xf32>
    %15 = tpu.matmul %0, %14, %cst_10 {dimension_numbers = #tpu.dot_dimension_numbers<[1], [0], [0], [1], [0, 0, 1, 1], [], []>} : vector<8x4xf32>, vector<4x256xf32>, vector<8x256xf32> -> vector<8x256xf32>
    %cst_11 = arith.constant dense<0.000000e+00> : vector<8xf32>
    %16 = vector.multi_reduction <add>, %15, %cst_11 [1] : vector<8x256xf32> to vector<8xf32>
    %17 = vector.shape_cast %16 : vector<8xf32> to vector<8x1xf32>
    %18 = arith.addf %8, %17 : vector<8x1xf32>
    %19 = arith.mulf %15, %15 : vector<8x256xf32>
    %cst_12 = arith.constant dense<0.000000e+00> : vector<8xf32>
    %20 = vector.multi_reduction <add>, %19, %cst_12 [1] : vector<8x256xf32> to vector<8xf32>
    %21 = vector.shape_cast %20 : vector<8xf32> to vector<8x1xf32>
    %22 = arith.addf %12, %21 : vector<8x1xf32>
    %cst_13 = arith.constant 0.001953125 : f32
    %23 = vector.broadcast %cst_13 : f32 to vector<8x1xf32>
    %24 = arith.mulf %18, %23 : vector<8x1xf32>
    %cst_14 = arith.constant 0.001953125 : f32
    %25 = vector.broadcast %cst_14 : f32 to vector<8x1xf32>
    %26 = arith.mulf %22, %25 : vector<8x1xf32>
    %27 = arith.mulf %24, %24 : vector<8x1xf32>
    %28 = arith.subf %26, %27 : vector<8x1xf32>
    %cst_15 = arith.constant 0.000000e+00 : f32
    %29 = vector.broadcast %cst_15 : f32 to vector<8x1xf32>
    %30 = arith.maximumf %28, %29 : vector<8x1xf32>
    %c0_16 = arith.constant 0 : index
    %c0_17 = arith.constant 0 : index
    %31 = vector.load %arg3[%c0_16, %c0_17] : memref<8x1xf32, #tpu.memory_space<vmem>>, vector<8x1xf32>
    %cst_18 = arith.constant 9.99999974E-6 : f32
    %32 = vector.broadcast %cst_18 : f32 to vector<8x1xf32>
    %33 = arith.addf %30, %32 : vector<8x1xf32>
    %34 = math.rsqrt %33 : vector<8x1xf32>
    %35 = arith.mulf %31, %34 : vector<8x1xf32>
    %c0_19 = arith.constant 0 : index
    %c0_20 = arith.constant 0 : index
    %36 = vector.load %arg4[%c0_19, %c0_20] : memref<8x1xf32, #tpu.memory_space<vmem>>, vector<8x1xf32>
    %37 = arith.mulf %24, %35 : vector<8x1xf32>
    %38 = arith.subf %36, %37 : vector<8x1xf32>
    %c0_21 = arith.constant 0 : index
    %c0_22 = arith.constant 0 : index
    %c0_23 = arith.constant 0 : index
    %39 = vector.load %arg1[%c0_21, %c0_22, %c0_23] : memref<2x4x256xf32, #tpu.memory_space<vmem>>, vector<1x4x256xf32>
    %40 = vector.shape_cast %39 : vector<1x4x256xf32> to vector<4x256xf32>
    %cst_24 = arith.constant dense<0.000000e+00> : vector<8x256xf32>
    %41 = tpu.matmul %0, %40, %cst_24 {dimension_numbers = #tpu.dot_dimension_numbers<[1], [0], [0], [1], [0, 0, 1, 1], [], []>} : vector<8x4xf32>, vector<4x256xf32>, vector<8x256xf32> -> vector<8x256xf32>
    %42 = vector.broadcast %35 : vector<8x1xf32> to vector<8x256xf32>
    %43 = arith.mulf %41, %42 : vector<8x256xf32>
    %44 = vector.broadcast %38 : vector<8x1xf32> to vector<8x256xf32>
    %45 = arith.addf %43, %44 : vector<8x256xf32>
    %c0_25 = arith.constant 0 : index
    %c0_26 = arith.constant 0 : index
    %c0_27 = arith.constant 0 : index
    %46 = vector.load %arg5[%c0_25, %c0_26, %c0_27] : memref<2x8x256xf32, #tpu.memory_space<vmem>>, vector<1x8x256xf32>
    %47 = vector.shape_cast %46 : vector<1x8x256xf32> to vector<8x256xf32>
    %48 = vector.shape_cast %45 : vector<8x256xf32> to vector<1x8x256xf32>
    tpu.vector_store %arg5[%c0_25, %c0_26, %c0_27], %48 {strides = array<i32>} : memref<2x8x256xf32, #tpu.memory_space<vmem>>, vector<1x8x256xf32>,
    %c1_28 = arith.constant 1 : index
    %c0_29 = arith.constant 0 : index
    %c0_30 = arith.constant 0 : index
    %49 = vector.load %arg1[%c1_28, %c0_29, %c0_30] : memref<2x4x256xf32, #tpu.memory_space<vmem>>, vector<1x4x256xf32>
    %50 = vector.shape_cast %49 : vector<1x4x256xf32> to vector<4x256xf32>
    %cst_31 = arith.constant dense<0.000000e+00> : vector<8x256xf32>
    %51 = tpu.matmul %0, %50, %cst_31 {dimension_numbers = #tpu.dot_dimension_numbers<[1], [0], [0], [1], [0, 0, 1, 1], [], []>} : vector<8x4xf32>, vector<4x256xf32>, vector<8x256xf32> -> vector<8x256xf32>
    %52 = vector.broadcast %35 : vector<8x1xf32> to vector<8x256xf32>
    %53 = arith.mulf %51, %52 : vector<8x256xf32>
    %54 = vector.broadcast %38 : vector<8x1xf32> to vector<8x256xf32>
    %55 = arith.addf %53, %54 : vector<8x256xf32>
    %c1_32 = arith.constant 1 : index
    %c0_33 = arith.constant 0 : index
    %c0_34 = arith.constant 0 : index
    %56 = vector.load %arg5[%c1_32, %c0_33, %c0_34] : memref<2x8x256xf32, #tpu.memory_space<vmem>>, vector<1x8x256xf32>
    %57 = vector.shape_cast %56 : vector<1x8x256xf32> to vector<8x256xf32>
    %58 = vector.shape_cast %55 : vector<8x256xf32> to vector<1x8x256xf32>
    tpu.vector_store %arg5[%c1_32, %c0_33, %c0_34], %58 {strides = array<i32>} : memref<2x8x256xf32, #tpu.memory_space<vmem>>, vector<1x8x256xf32>,
    return
  }
  func.func @transform_0(%arg0: i32) -> (i32, i32, i32) {
    %c0_i32 = arith.constant 0 : i32
    %c0_i32_0 = arith.constant 0 : i32
    %c0_i32_1 = arith.constant 0 : i32
    %c0_i32_2 = arith.constant 0 : i32
    return %c0_i32, %c0_i32_0, %c0_i32_1 : i32, i32, i32
  }
  func.func @transform_1(%arg0: i32) -> (i32, i32) {
    %c0_i32 = arith.constant 0 : i32
    %c0_i32_0 = arith.constant 0 : i32
    %c0_i32_1 = arith.constant 0 : i32
    return %c0_i32, %c0_i32_0 : i32, i32
  }
  func.func @transform_2(%arg0: i32) -> (i32, i32) {
    %c0_i32 = arith.constant 0 : i32
    %c0_i32_0 = arith.constant 0 : i32
    %c0_i32_1 = arith.constant 0 : i32
    return %c0_i32, %c0_i32_0 : i32, i32
  }
  func.func @transform_3(%arg0: i32) -> (i32, i32) {
    %c0_i32 = arith.constant 0 : i32
    %c0_i32_0 = arith.constant 0 : i32
    %c0_i32_1 = arith.constant 0 : i32
    return %c0_i32, %c0_i32_0 : i32, i32
  }
  func.func @transform_4(%arg0: i32) -> (i32, i32, i32) {
    %c0_i32 = arith.constant 0 : i32
    %c0_i32_0 = arith.constant 0 : i32
    %c0_i32_1 = arith.constant 0 : i32
    %c0_i32_2 = arith.constant 0 : i32
    return %c0_i32, %c0_i32_0, %c0_i32_1 : i32, i32, i32
  }
}

</mosaic_0001>

<llo_original>
// kernel: tpu_custom_call.1
$region0: #{tpu_custom_call.1}
  #allocation0 [shape = 'u32[]', space=smem, size = 0x4, offset = 0x4, fixed_abs, tag = 'smem constant byte address 0x4 - core index']
  #allocation1 [shape = 'u32[144,128]{1,0:T(1,128)}', space=vmem, size = 0x12000, scoped, tag = 'internal scratch']
  %s0 = inlined_call_operand.vmem [shape: f32[2,4,256], index: 0, kind: input, shape index: {}]
  %s1 = inlined_call_operand.vmem [shape: f32[8,4], index: 1, kind: input, shape index: {}]
  %s2 = inlined_call_operand.vmem [shape: f32[8,1], index: 2, kind: input, shape index: {}]
  %s3 = inlined_call_operand.vmem [shape: f32[8,1], index: 3, kind: input, shape index: {}]
  %s4 = inlined_call_operand.hbm [shape: f32[2,8,256], index: 4, kind: output, shape index: {}]
  %s5 = sld [smem:[#allocation0]]
  $region26: #{tpu_custom_call.1} parent=0
    _
  %s7 = ssub.s32 1, %s5
  %s8 = scalar_select 0, %s7, %s5
  $region1: #{tpu_custom_call.1} parent=0
    #allocation2 [shape = 'u8[16384]{0}', space=vmem, size = 0x4000, scoped, tag = 'output window, operand 0, single buffered']
    #allocation3 [shape = 's32[1]{0}', space=sflag, size = 0x4, scoped, tag = 'scoped memory for tpu_custom_call.1']
    %9 = vsyncpa [#allocation3], 0
    // Predicated region
    $region2: #{tpu_custom_call.1} parent=1 // pred_check
      _
    $region3: #{tpu_custom_call.1} parent=1 // pred_check_branch
      %11 = sbr.rel (0) target = $region5
    $region4: #{tpu_custom_call.1} parent=1 // pred_region
      _
    $region5: #{tpu_custom_call.1} parent=1 // pred_fallthru
      _
    // Predicated region
    $region6: #{tpu_custom_call.1} parent=1 // pred_check
      _
    $region7: #{tpu_custom_call.1} parent=1 // pred_check_branch
      %13 = sbr.rel (0) target = $region9
    $region8: #{tpu_custom_call.1} parent=1 // pred_region
      _
    $region9: #{tpu_custom_call.1} parent=1 // pred_fallthru
      _
    // Predicated region
    $region10: #{tpu_custom_call.1} parent=1 // pred_check
      _
    $region11: #{tpu_custom_call.1} parent=1 // pred_check_branch
      %15 = sbr.rel (0) target = $region13
    $region12: #{tpu_custom_call.1} parent=1 // pred_region
      _
    $region13: #{tpu_custom_call.1} parent=1 // pred_fallthru
      _
    // Predicated region
    $region14: #{tpu_custom_call.1} parent=1 // pred_check
      _
    $region15: #{tpu_custom_call.1} parent=1 // pred_check_branch
      %17 = sbr.rel (0) target = $region17
    $region16: #{tpu_custom_call.1} parent=1 // pred_region
      _
    $region17: #{tpu_custom_call.1} parent=1 // pred_fallthru
      _
    %v18 = vld [vmem:[%s1] sm:$0xff]
    %v19 = vld [vmem:[%s0] sm:$0xff]
    %v21 = vcombine.high %v19, %v19
    %vm22 = vcmask 31744
    %v24 = vsel %vm22, %v18, 0
    %vm26 = vcmask 1043456
    %v27 = vsel %vm26, %v19, 0
    %v29 = vsel %vm26, %v21, 0
    %31 = vmatprep.subr.mxu0 %v29
    %32 = vmatpush1.msra.mxu0 %v27
    %33 = vmatprep.subr.mxu0 0.0
    %34 = vmatpush1.msra.mxu0 0.0
    %35 = vmatprep.subr.mxu0 0.0
    %36 = vmatpush1.msra.mxu0 0.0
    %37 = vmatprep.subr.mxu0 0.0
    %38 = vmatpush1.msra.mxu0 0.0
    %39 = vmatprep.subr.mxu0 0.0
    %40 = vmatpush1.msra.mxu0 0.0
    %41 = vmatprep.subr.mxu0 0.0
    %42 = vmatpush1.msra.mxu0 0.0
    %43 = vmatprep.subr.mxu0 0.0
    %44 = vmatpush1.msra.mxu0 0.0
    %45 = vmatprep.subr.mxu0 0.0
    %46 = vmatpush1.msra.mxu0 0.0
    %47 = vmatprep.subr.mxu0 0.0
    %48 = vmatpush1.msra.mxu0 0.0
    %49 = vmatprep.subr.mxu0 0.0
    %50 = vmatpush1.msra.mxu0 0.0
    %51 = vmatprep.subr.mxu0 0.0
    %52 = vmatpush1.msra.mxu0 0.0
    %53 = vmatprep.subr.mxu0 0.0
    %54 = vmatpush1.msra.mxu0 0.0
    %55 = vmatprep.subr.mxu0 0.0
    %56 = vmatpush1.msra.mxu0 0.0
    %57 = vmatprep.subr.mxu0 0.0
    %58 = vmatpush1.msra.mxu0 0.0
    %59 = vmatprep.subr.mxu0 0.0
    %60 = vmatpush1.msra.mxu0 0.0
    %61 = vmatprep.subr.mxu0 0.0
    %62 = vmatpush1.msra.mxu0 0.0
    %63 = vmatprep.subr.mxu0 0.0
    %64 = vmatpush1.msra.mxu0 0.0
    %65 = vmatprep.subr.mxu0 0.0
    %66 = vmatpush1.msra.mxu0 0.0
    %67 = vmatprep.subr.mxu0 0.0
    %68 = vmatpush1.msra.mxu0 0.0
    %69 = vmatprep.subr.mxu0 0.0
    %70 = vmatpush1.msra.mxu0 0.0
    %71 = vmatprep.subr.mxu0 0.0
    %72 = vmatpush1.msra.mxu0 0.0
    %73 = vmatprep.subr.mxu0 0.0
    %74 = vmatpush1.msra.mxu0 0.0
    %75 = vmatprep.subr.mxu0 0.0
    %76 = vmatpush1.msra.mxu0 0.0
    %77 = vmatprep.subr.mxu0 0.0
    %78 = vmatpush1.msra.mxu0 0.0
    %79 = vmatprep.subr.mxu0 0.0
    %80 = vmatpush1.msra.mxu0 0.0
    %81 = vmatprep.subr.mxu0 0.0
    %82 = vmatpush1.msra.mxu0 0.0
    %83 = vmatprep.subr.mxu0 0.0
    %84 = vmatpush1.msra.mxu0 0.0
    %85 = vmatprep.subr.mxu0 0.0
    %86 = vmatpush1.msra.mxu0 0.0
    %87 = vmatprep.subr.mxu0 0.0
    %88 = vmatpush1.msra.mxu0 0.0
    %89 = vmatprep.subr.mxu0 0.0
    %90 = vmatpush1.msra.mxu0 0.0
    %91 = vmatprep.subr.mxu0 0.0
    %92 = vmatpush1.msra.mxu0 0.0
    %93 = vmatprep.subr.mxu0 0.0
    %94 = vmatpush1.msra.mxu0 0.0
    %95 = vmatprep.mubr.f32.mxu0 0.0
    %96 = vmatmul.mubr.f32.gmra.mrb[0].mxu0 %v24
    %v97 = vpop.f32.mrb[0].mxu0
    %v98 = vadd.f32 0.0, %v97
    %v99 = vpop.f32.mrb[0].mxu0
    %v100 = vadd.f32 0.0, %v99
    %101 = vdwg.mxu0
    %v102 = vadd.f32 %v98, %v100
    %103 = vadd.xlane.f32.xlu0 %v102
    %v104 = vpop.xlane.xlu0 %103
    %v105 = vadd.f32 %v104, 0.0
    %v106 = vmul.f32 %v98, %v98
    %v107 = vmul.f32 %v100, %v100
    %v108 = vadd.f32 %v106, %v107
    %109 = vadd.xlane.f32.xlu0 %v108
    %v110 = vpop.xlane.xlu0 %109
    %v111 = vadd.f32 %v110, 0.0
    %s112 = scalar_lea.vmem %s0, 8
    %v113 = vld [vmem:[%s112] sm:$0xff]
    %v115 = vcombine.high %v113, %v113
    %v116 = vsel %vm26, %v113, 0
    %v118 = vsel %vm26, %v115, 0
    %120 = vmatprep.subr.mxu0 %v118
    %121 = vmatpush1.msra.mxu0 %v116
    %122 = vmatprep.subr.mxu0 0.0
    %123 = vmatpush1.msra.mxu0 0.0
    %124 = vmatprep.subr.mxu0 0.0
    %125 = vmatpush1.msra.mxu0 0.0
    %126 = vmatprep.subr.mxu0 0.0
    %127 = vmatpush1.msra.mxu0 0.0
    %128 = vmatprep.subr.mxu0 0.0
    %129 = vmatpush1.msra.mxu0 0.0
    %130 = vmatprep.subr.mxu0 0.0
    %131 = vmatpush1.msra.mxu0 0.0
    %132 = vmatprep.subr.mxu0 0.0
    %133 = vmatpush1.msra.mxu0 0.0
    %134 = vmatprep.subr.mxu0 0.0
    %135 = vmatpush1.msra.mxu0 0.0
    %136 = vmatprep.subr.mxu0 0.0
    %137 = vmatpush1.msra.mxu0 0.0
    %138 = vmatprep.subr.mxu0 0.0
    %139 = vmatpush1.msra.mxu0 0.0
    %140 = vmatprep.subr.mxu0 0.0
    %141 = vmatpush1.msra.mxu0 0.0
    %142 = vmatprep.subr.mxu0 0.0
    %143 = vmatpush1.msra.mxu0 0.0
    %144 = vmatprep.subr.mxu0 0.0
    %145 = vmatpush1.msra.mxu0 0.0
    %146 = vmatprep.subr.mxu0 0.0
    %147 = vmatpush1.msra.mxu0 0.0
    %148 = vmatprep.subr.mxu0 0.0
    %149 = vmatpush1.msra.mxu0 0.0
    %150 = vmatprep.subr.mxu0 0.0
    %151 = vmatpush1.msra.mxu0 0.0
    %152 = vmatprep.subr.mxu0 0.0
    %153 = vmatpush1.msra.mxu0 0.0
    %154 = vmatprep.subr.mxu0 0.0
    %155 = vmatpush1.msra.mxu0 0.0
    %156 = vmatprep.subr.mxu0 0.0
    %157 = vmatpush1.msra.mxu0 0.0
    %158 = vmatprep.subr.mxu0 0.0
    %159 = vmatpush1.msra.mxu0 0.0
    %160 = vmatprep.subr.mxu0 0.0
    %161 = vmatpush1.msra.mxu0 0.0
    %162 = vmatprep.subr.mxu0 0.0
    %163 = vmatpush1.msra.mxu0 0.0
    %164 = vmatprep.subr.mxu0 0.0
    %165 = vmatpush1.msra.mxu0 0.0
    %166 = vmatprep.subr.mxu0 0.0
    %167 = vmatpush1.msra.mxu0 0.0
    %168 = vmatprep.subr.mxu0 0.0
    %169 = vmatpush1.msra.mxu0 0.0
    %170 = vmatprep.subr.mxu0 0.0
    %171 = vmatpush1.msra.mxu0 0.0
    %172 = vmatprep.subr.mxu0 0.0
    %173 = vmatpush1.msra.mxu0 0.0
    %174 = vmatprep.subr.mxu0 0.0
    %175 = vmatpush1.msra.mxu0 0.0
    %176 = vmatprep.subr.mxu0 0.0
    %177 = vmatpush1.msra.mxu0 0.0
    %178 = vmatprep.subr.mxu0 0.0
    %179 = vmatpush1.msra.mxu0 0.0
    %180 = vmatprep.subr.mxu0 0.0
    %181 = vmatpush1.msra.mxu0 0.0
    %182 = vmatprep.subr.mxu0 0.0
    %183 = vmatpush1.msra.mxu0 0.0
    %184 = vmatprep.mubr.f32.mxu0 0.0
    %185 = vmatmul.mubr.f32.gmra.mrb[0].mxu0 %v24
    %v186 = vpop.f32.mrb[0].mxu0
    %v187 = vadd.f32 0.0, %v186
    %v188 = vpop.f32.mrb[0].mxu0
    %v189 = vadd.f32 0.0, %v188
    %190 = vdwg.mxu0
    %v191 = vadd.f32 %v187, %v189
    %192 = vadd.xlane.f32.xlu0 %v191
    %v193 = vpop.xlane.xlu0 %192
    %v194 = vadd.f32 %v105, %v193
    %v195 = vmul.f32 %v187, %v187
    %v196 = vmul.f32 %v189, %v189
    %v197 = vadd.f32 %v195, %v196
    %198 = vadd.xlane.f32.xlu0 %v197
    %v199 = vpop.xlane.xlu0 %198
    %v200 = vadd.f32 %v111, %v199
    %v201 = vmul.f32 %v194, 0.001953125
    %v202 = vmul.f32 %v200, 0.001953125
    %v203 = vmul.f32 %v201, %v201
    %v204 = vsub.f32 %v202, %v203
    %v205 = vmax.f32 %v204, 0.0
    %v206 = vld [vmem:[%s2] sm:$0xff]
    %v207 = vadd.f32 %v205, 1e-05
    %v208 = vrsqrt.pop %v207
    %v209 = vmul.f32 %v206, %v208
    %v210 = vld [vmem:[%s3] sm:$0xff]
    %v211 = vmul.f32 %v201, %v209
    %v212 = vsub.f32 %v210, %v211
    %214 = vset.pattern.permute.xlu0 0
    %215 = vperm.xlu0 %214, %v209
    %v216 = vpop.permute.xlu0 %215
    %v218 = vmul.f32 %v98, %v216
    %v219 = vmul.f32 %v100, %v216
    %221 = vset.pattern.permute.xlu0 0
    %222 = vperm.xlu0 %221, %v212
    %v223 = vpop.permute.xlu0 %222
    %v225 = vadd.f32 %v218, %v223
    %v226 = vadd.f32 %v219, %v223
    %227 = vst [vmem:[#allocation2] sm:$0xff] %v225
    %228 = vst [vmem:[#allocation2 + $0x8] sm:$0xff] %v226
    %v229 = vld [vmem:[%s112] sm:$0xff]
    %v231 = vcombine.high %v229, %v229
    %v232 = vsel %vm26, %v229, 0
    %v234 = vsel %vm26, %v231, 0
    %236 = vmatprep.subr.mxu0 %v234
    %237 = vmatpush1.msra.mxu0 %v232
    %238 = vmatprep.subr.mxu0 0.0
    %239 = vmatpush1.msra.mxu0 0.0
    %240 = vmatprep.subr.mxu0 0.0
    %241 = vmatpush1.msra.mxu0 0.0
    %242 = vmatprep.subr.mxu0 0.0
    %243 = vmatpush1.msra.mxu0 0.0
    %244 = vmatprep.subr.mxu0 0.0
    %245 = vmatpush1.msra.mxu0 0.0
    %246 = vmatprep.subr.mxu0 0.0
    %247 = vmatpush1.msra.mxu0 0.0
    %248 = vmatprep.subr.mxu0 0.0
    %249 = vmatpush1.msra.mxu0 0.0
    %250 = vmatprep.subr.mxu0 0.0
    %251 = vmatpush1.msra.mxu0 0.0
    %252 = vmatprep.subr.mxu0 0.0
    %253 = vmatpush1.msra.mxu0 0.0
    %254 = vmatprep.subr.mxu0 0.0
    %255 = vmatpush1.msra.mxu0 0.0
    %256 = vmatprep.subr.mxu0 0.0
    %257 = vmatpush1.msra.mxu0 0.0
    %258 = vmatprep.subr.mxu0 0.0
    %259 = vmatpush1.msra.mxu0 0.0
    %260 = vmatprep.subr.mxu0 0.0
    %261 = vmatpush1.msra.mxu0 0.0
    %262 = vmatprep.subr.mxu0 0.0
    %263 = vmatpush1.msra.mxu0 0.0
    %264 = vmatprep.subr.mxu0 0.0
    %265 = vmatpush1.msra.mxu0 0.0
    %266 = vmatprep.subr.mxu0 0.0
    %267 = vmatpush1.msra.mxu0 0.0
    %268 = vmatprep.subr.mxu0 0.0
    %269 = vmatpush1.msra.mxu0 0.0
    %270 = vmatprep.subr.mxu0 0.0
    %271 = vmatpush1.msra.mxu0 0.0
    %272 = vmatprep.subr.mxu0 0.0
    %273 = vmatpush1.msra.mxu0 0.0
    %274 = vmatprep.subr.mxu0 0.0
    %275 = vmatpush1.msra.mxu0 0.0
    %276 = vmatprep.subr.mxu0 0.0
    %277 = vmatpush1.msra.mxu0 0.0
    %278 = vmatprep.subr.mxu0 0.0
    %279 = vmatpush1.msra.mxu0 0.0
    %280 = vmatprep.subr.mxu0 0.0
    %281 = vmatpush1.msra.mxu0 0.0
    %282 = vmatprep.subr.mxu0 0.0
    %283 = vmatpush1.msra.mxu0 0.0
    %284 = vmatprep.subr.mxu0 0.0
    %285 = vmatpush1.msra.mxu0 0.0
    %286 = vmatprep.subr.mxu0 0.0
    %287 = vmatpush1.msra.mxu0 0.0
    %288 = vmatprep.subr.mxu0 0.0
    %289 = vmatpush1.msra.mxu0 0.0
    %290 = vmatprep.subr.mxu0 0.0
    %291 = vmatpush1.msra.mxu0 0.0
    %292 = vmatprep.subr.mxu0 0.0
    %293 = vmatpush1.msra.mxu0 0.0
    %294 = vmatprep.subr.mxu0 0.0
    %295 = vmatpush1.msra.mxu0 0.0
    %296 = vmatprep.subr.mxu0 0.0
    %297 = vmatpush1.msra.mxu0 0.0
    %298 = vmatprep.subr.mxu0 0.0
    %299 = vmatpush1.msra.mxu0 0.0
    %300 = vmatprep.mubr.f32.mxu0 0.0
    %301 = vmatmul.mubr.f32.gmra.mrb[0].mxu0 %v24
    %v302 = vpop.f32.mrb[0].mxu0
    %v303 = vadd.f32 0.0, %v302
    %v304 = vpop.f32.mrb[0].mxu0
    %v305 = vadd.f32 0.0, %v304
    %306 = vdwg.mxu0
    %v307 = vmul.f32 %v303, %v216
    %v308 = vmul.f32 %v305, %v216
    %v309 = vadd.f32 %v307, %v223
    %v310 = vadd.f32 %v308, %v223
    %s311 = scalar_lea.vmem [#allocation2], 16
    %312 = vst [vmem:[%s311] sm:$0xff] %v309
    %313 = vst [vmem:[%s311 + $0x8] sm:$0xff] %v310
    // Predicated region
    $region18: #{tpu_custom_call.1} parent=1 // pred_check
      _
    $region19: #{tpu_custom_call.1} parent=1 // pred_check_branch
      %315 = sbr.rel (0) target = $region21
    $region20: #{tpu_custom_call.1} parent=1 // pred_region
      %s317 = ssub.s32 512, 512
      %318 = vsyncadd [#allocation3], %s317
      %s319 = sshll.u32 [#allocation2], 4
      %s320 = int_to_ptr.vmem [resolvable:$true] %s319
      %325 = dma.vmem_to_hbm [thread:$0]  %s320, 512, %s4, [#allocation3], 256, 256, 16
    $region21: #{tpu_custom_call.1} parent=1 // pred_fallthru
      _
    // Predicated region
    $region22: #{tpu_custom_call.1} parent=1 // pred_check
      _
    $region23: #{tpu_custom_call.1} parent=1 // pred_check_branch
      %327 = sbr.rel (0) target = $region25
    $region24: #{tpu_custom_call.1} parent=1 // pred_region
      %328 = dma.done [#allocation3], 512
    $region25: #{tpu_custom_call.1} parent=1 // pred_fallthru
      _
    %329 = vsyncpa [#allocation3], 1

</llo_original>
